<compile_context>
chip_gen: v5e
topology: v5e:2x2
jax: 0.10.0
libtpu: 0.0.40
codegen_flags: <defaults>
</compile_context>

<pallas_src>
import functools

import jax
import jax.numpy as jnp
from jax.experimental import pallas as pl
from jax.experimental.pallas import tpu as pltpu

# ----------------------------- problem sizes -----------------------------
N = 2                    # batch
OBS_DIM = 24             # observation dim
ACT_DIM = 8              # action dim
HIDDEN = (64, 32)        # hidden_sizes
IN_DIM = OBS_DIM + ACT_DIM


# ----------------------------- fused kernel -----------------------------
def fused_q_kernel(*refs, n_hidden):
    # refs layout:
    #   [obs, act, w1_obs, w1_act, b1, (w_i, b_i) for hidden layers 2..n_hidden,
    #    w_out_row (1, H_last), b_out (1, 1), out (N, 1)]
    obs_ref, act_ref, w1o_ref, w1a_ref, b1_ref = refs[:5]

    # Layer 1: concat absorbed into the weight split -> two MXU dots, f32 accum.
    h = jnp.dot(obs_ref[...], w1o_ref[...], preferred_element_type=jnp.float32)
    h = h + jnp.dot(act_ref[...], w1a_ref[...], preferred_element_type=jnp.float32)
    h = jnp.maximum(h + b1_ref[...], 0.0)

    # Remaining hidden layers (static Python unroll — n_hidden is a compile-time int).
    idx = 5
    for _ in range(n_hidden - 1):
        w_ref, b_ref = refs[idx], refs[idx + 1]
        idx += 2
        h = jnp.maximum(
            jnp.dot(h, w_ref[...], preferred_element_type=jnp.float32) + b_ref[...],
            0.0)

    # Output layer (HID -> 1) on the VPU: broadcast-mul + lane reduce, not a
    # 1-column matmul.
    wout_ref, bout_ref, out_ref = refs[idx], refs[idx + 1], refs[idx + 2]
    v = jnp.sum(h * wout_ref[...], axis=-1, keepdims=True) + bout_ref[...]
    out_ref[...] = v


def mlp_q_forward(obs, act, params):
    """obs: (N, OBS_DIM), act: (N, ACT_DIM). params['w'][i]: (in, out), params['b'][i]: (1, out)."""
    n = obs.shape[0]
    ws, bs = params["w"], params["b"]
    n_hidden = len(ws) - 1               # number of hidden (ReLU) layers

    # Split W1 rows so the concat happens in the weights, not the activations.
    w1 = ws[0]
    w1_obs = w1[:OBS_DIM]
    w1_act = w1[OBS_DIM:]

    inputs = [obs, act, w1_obs, w1_act, bs[0]]
    for i in range(1, n_hidden):
        inputs += [ws[i], bs[i]]
    w_out_row = ws[-1].reshape(1, -1)    # (1, H_last) row for the VPU projection
    b_out = bs[-1].reshape(1, 1)
    inputs += [w_out_row, b_out]

    # Everything is 2-D and full-extent: constant index maps, resident in VMEM.
    in_specs = [pl.BlockSpec(x.shape, lambda i: (0, 0)) for x in inputs]

    # Cheap cost hint for XLA scheduling around the custom call.
    flops = 2 * n * (OBS_DIM * HIDDEN[0] + ACT_DIM * HIDDEN[0])
    for a, b in zip(HIDDEN[:-1], HIDDEN[1:]):
        flops += 2 * n * a * b
    flops += 2 * n * HIDDEN[-1]
    bytes_accessed = sum(int(x.size) * x.dtype.itemsize for x in inputs) + n * 4

    out = pl.pallas_call(
        functools.partial(fused_q_kernel, n_hidden=n_hidden),
        out_shape=jax.ShapeDtypeStruct((n, 1), jnp.float32),
        grid=(1,),
        in_specs=in_specs,
        out_specs=pl.BlockSpec((n, 1), lambda i: (0, 0)),
        compiler_params=pltpu.CompilerParams(
            dimension_semantics=("arbitrary",)),
        cost_estimate=pl.CostEstimate(
            flops=flops, transcendentals=0, bytes_accessed=bytes_accessed),
    )(*inputs)
    return jnp.squeeze(out, axis=-1)     # torch.squeeze(q, -1)


@jax.jit
def q_function_forward(obs, act, params):
    return mlp_q_forward(obs, act, params)


# ----------------------------- pure-JAX reference -----------------------------
def reference_forward(obs, act, params):
    x = jnp.concatenate([obs, act], axis=-1)
    ws, bs = params["w"], params["b"]
    h = x
    for i in range(len(ws) - 1):
        h = jnp.maximum(h @ ws[i] + bs[i], 0.0)
    q = h @ ws[-1] + bs[-1]
    return jnp.squeeze(q, axis=-1)


if __name__ == "__main__":
    key = jax.random.PRNGKey(0)
    keys = jax.random.split(key, 2 + 2 * (len(HIDDEN) + 1))

    obs = jax.random.normal(keys[0], (N, OBS_DIM), jnp.float32)
    act = jax.random.normal(keys[1], (N, ACT_DIM), jnp.float32)

    # Linear weights stored pre-transposed as (in, out); biases as (1, out) rows.
    sizes = [IN_DIM] + list(HIDDEN) + [1]
    ws, bs = [], []
    for j in range(len(sizes) - 1):
        kw, kb = keys[2 + 2 * j], keys[3 + 2 * j]
        ws.append(0.1 * jax.random.normal(kw, (sizes[j], sizes[j + 1]), jnp.float32))
        bs.append(0.1 * jax.random.normal(kb, (1, sizes[j + 1]), jnp.float32))
    params = {"w": ws, "b": bs}

    out = jax.block_until_ready(q_function_forward(obs, act, params))
    ref = jax.block_until_ready(reference_forward(obs, act, params))

    assert out.shape == (N,), out.shape
    assert jnp.allclose(out, ref, atol=1e-4, rtol=1e-4), (out, ref)
    print("KERNEL_OK")
</pallas_src>

<mosaic_0001>
module attributes {stable_mosaic.version = 11 : i64} {
  func.func @fused_q_kernel(%arg0: i32, %arg1: memref<2x24xf32, #tpu.memory_space<vmem>>, %arg2: memref<2x8xf32, #tpu.memory_space<vmem>>, %arg3: memref<24x64xf32, #tpu.memory_space<vmem>>, %arg4: memref<8x64xf32, #tpu.memory_space<vmem>>, %arg5: memref<1x64xf32, #tpu.memory_space<vmem>>, %arg6: memref<64x32xf32, #tpu.memory_space<vmem>>, %arg7: memref<1x32xf32, #tpu.memory_space<vmem>>, %arg8: memref<1x32xf32, #tpu.memory_space<vmem>>, %arg9: memref<1x1xf32, #tpu.memory_space<vmem>>, %arg10: memref<2x1xf32, #tpu.memory_space<vmem>>) attributes {dimension_semantics = [#tpu.dimension_semantics<arbitrary>], iteration_bounds = array<i64: 1>, scalar_prefetch = 0 : i64, scratch_operands = 0 : i64, tpu.core_type = #tpu.core_type<tc>, window_params = [{pipeline_mode = #tpu.pipeline_mode<synchronous>, transform_indices = @transform_0, window_bounds = array<i64: 2, 24>}, {pipeline_mode = #tpu.pipeline_mode<synchronous>, transform_indices = @transform_1, window_bounds = array<i64: 2, 8>}, {pipeline_mode = #tpu.pipeline_mode<synchronous>, transform_indices = @transform_2, window_bounds = array<i64: 24, 64>}, {pipeline_mode = #tpu.pipeline_mode<synchronous>, transform_indices = @transform_3, window_bounds = array<i64: 8, 64>}, {pipeline_mode = #tpu.pipeline_mode<synchronous>, transform_indices = @transform_4, window_bounds = array<i64: 1, 64>}, {pipeline_mode = #tpu.pipeline_mode<synchronous>, transform_indices = @transform_5, window_bounds = array<i64: 64, 32>}, {pipeline_mode = #tpu.pipeline_mode<synchronous>, transform_indices = @transform_6, window_bounds = array<i64: 1, 32>}, {pipeline_mode = #tpu.pipeline_mode<synchronous>, transform_indices = @transform_7, window_bounds = array<i64: 1, 32>}, {pipeline_mode = #tpu.pipeline_mode<synchronous>, transform_indices = @transform_8, window_bounds = array<i64: 1, 1>}, {pipeline_mode = #tpu.pipeline_mode<synchronous>, transform_indices = @transform_9, window_bounds = array<i64: 2, 1>}]} {
    %c0 = arith.constant 0 : index
    %c0_0 = arith.constant 0 : index
    %0 = vector.load %arg1[%c0, %c0_0] : memref<2x24xf32, #tpu.memory_space<vmem>>, vector<2x24xf32>
    %c0_1 = arith.constant 0 : index
    %c0_2 = arith.constant 0 : index
    %1 = vector.load %arg3[%c0_1, %c0_2] : memref<24x64xf32, #tpu.memory_space<vmem>>, vector<24x64xf32>
    %cst = arith.constant dense<0.000000e+00> : vector<2x64xf32>
    %2 = tpu.matmul %0, %1, %cst {dimension_numbers = #tpu.dot_dimension_numbers<[1], [0], [0], [1], [0, 0, 1, 1], [], []>} : vector<2x24xf32>, vector<24x64xf32>, vector<2x64xf32> -> vector<2x64xf32>
    %c0_3 = arith.constant 0 : index
    %c0_4 = arith.constant 0 : index
    %3 = vector.load %arg2[%c0_3, %c0_4] : memref<2x8xf32, #tpu.memory_space<vmem>>, vector<2x8xf32>
    %c0_5 = arith.constant 0 : index
    %c0_6 = arith.constant 0 : index
    %4 = vector.load %arg4[%c0_5, %c0_6] : memref<8x64xf32, #tpu.memory_space<vmem>>, vector<8x64xf32>
    %cst_7 = arith.constant dense<0.000000e+00> : vector<2x64xf32>
    %5 = tpu.matmul %3, %4, %cst_7 {dimension_numbers = #tpu.dot_dimension_numbers<[1], [0], [0], [1], [0, 0, 1, 1], [], []>} : vector<2x8xf32>, vector<8x64xf32>, vector<2x64xf32> -> vector<2x64xf32>
    %6 = arith.addf %2, %5 : vector<2x64xf32>
    %c0_8 = arith.constant 0 : index
    %c0_9 = arith.constant 0 : index
    %7 = vector.load %arg5[%c0_8, %c0_9] : memref<1x64xf32, #tpu.memory_space<vmem>>, vector<1x64xf32>
    %8 = vector.broadcast %7 : vector<1x64xf32> to vector<2x64xf32>
    %9 = arith.addf %6, %8 : vector<2x64xf32>
    %cst_10 = arith.constant 0.000000e+00 : f32
    %10 = vector.broadcast %cst_10 : f32 to vector<2x64xf32>
    %11 = arith.maximumf %9, %10 : vector<2x64xf32>
    %c0_11 = arith.constant 0 : index
    %c0_12 = arith.constant 0 : index
    %12 = vector.load %arg6[%c0_11, %c0_12] : memref<64x32xf32, #tpu.memory_space<vmem>>, vector<64x32xf32>
    %cst_13 = arith.constant dense<0.000000e+00> : vector<2x32xf32>
    %13 = tpu.matmul %11, %12, %cst_13 {dimension_numbers = #tpu.dot_dimension_numbers<[1], [0], [0], [1], [0, 0, 1, 1], [], []>} : vector<2x64xf32>, vector<64x32xf32>, vector<2x32xf32> -> vector<2x32xf32>
    %c0_14 = arith.constant 0 : index
    %c0_15 = arith.constant 0 : index
    %14 = vector.load %arg7[%c0_14, %c0_15] : memref<1x32xf32, #tpu.memory_space<vmem>>, vector<1x32xf32>
    %15 = vector.broadcast %14 : vector<1x32xf32> to vector<2x32xf32>
    %16 = arith.addf %13, %15 : vector<2x32xf32>
    %cst_16 = arith.constant 0.000000e+00 : f32
    %17 = vector.broadcast %cst_16 : f32 to vector<2x32xf32>
    %18 = arith.maximumf %16, %17 : vector<2x32xf32>
    %c0_17 = arith.constant 0 : index
    %c0_18 = arith.constant 0 : index
    %19 = vector.load %arg8[%c0_17, %c0_18] : memref<1x32xf32, #tpu.memory_space<vmem>>, vector<1x32xf32>
    %20 = vector.broadcast %19 : vector<1x32xf32> to vector<2x32xf32>
    %21 = arith.mulf %18, %20 : vector<2x32xf32>
    %cst_19 = arith.constant dense<0.000000e+00> : vector<2xf32>
    %22 = vector.multi_reduction <add>, %21, %cst_19 [1] : vector<2x32xf32> to vector<2xf32>
    %23 = vector.shape_cast %22 : vector<2xf32> to vector<2x1xf32>
    %c0_20 = arith.constant 0 : index
    %c0_21 = arith.constant 0 : index
    %24 = vector.load %arg9[%c0_20, %c0_21] : memref<1x1xf32, #tpu.memory_space<vmem>>, vector<1x1xf32>
    %25 = vector.broadcast %24 : vector<1x1xf32> to vector<2x1xf32>
    %26 = arith.addf %23, %25 : vector<2x1xf32>
    %c0_22 = arith.constant 0 : index
    %c0_23 = arith.constant 0 : index
    %27 = vector.load %arg10[%c0_22, %c0_23] : memref<2x1xf32, #tpu.memory_space<vmem>>, vector<2x1xf32>
    tpu.vector_store %arg10[%c0_22, %c0_23], %26 {strides = array<i32>} : memref<2x1xf32, #tpu.memory_space<vmem>>, vector<2x1xf32>,
    return
  }
  func.func @transform_0(%arg0: i32) -> (i32, i32) {
    %c0_i32 = arith.constant 0 : i32
    %c0_i32_0 = arith.constant 0 : i32
    %c0_i32_1 = arith.constant 0 : i32
    return %c0_i32, %c0_i32_0 : i32, i32
  }
  func.func @transform_1(%arg0: i32) -> (i32, i32) {
    %c0_i32 = arith.constant 0 : i32
    %c0_i32_0 = arith.constant 0 : i32
    %c0_i32_1 = arith.constant 0 : i32
    return %c0_i32, %c0_i32_0 : i32, i32
  }
  func.func @transform_2(%arg0: i32) -> (i32, i32) {
    %c0_i32 = arith.constant 0 : i32
    %c0_i32_0 = arith.constant 0 : i32
    %c0_i32_1 = arith.constant 0 : i32
    return %c0_i32, %c0_i32_0 : i32, i32
  }
  func.func @transform_3(%arg0: i32) -> (i32, i32) {
    %c0_i32 = arith.constant 0 : i32
    %c0_i32_0 = arith.constant 0 : i32
    %c0_i32_1 = arith.constant 0 : i32
    return %c0_i32, %c0_i32_0 : i32, i32
  }
  func.func @transform_4(%arg0: i32) -> (i32, i32) {
    %c0_i32 = arith.constant 0 : i32
    %c0_i32_0 = arith.constant 0 : i32
    %c0_i32_1 = arith.constant 0 : i32
    return %c0_i32, %c0_i32_0 : i32, i32
  }
  func.func @transform_5(%arg0: i32) -> (i32, i32) {
    %c0_i32 = arith.constant 0 : i32
    %c0_i32_0 = arith.constant 0 : i32
    %c0_i32_1 = arith.constant 0 : i32
    return %c0_i32, %c0_i32_0 : i32, i32
  }
  func.func @transform_6(%arg0: i32) -> (i32, i32) {
    %c0_i32 = arith.constant 0 : i32
    %c0_i32_0 = arith.constant 0 : i32
    %c0_i32_1 = arith.constant 0 : i32
    return %c0_i32, %c0_i32_0 : i32, i32
  }
  func.func @transform_7(%arg0: i32) -> (i32, i32) {
    %c0_i32 = arith.constant 0 : i32
    %c0_i32_0 = arith.constant 0 : i32
    %c0_i32_1 = arith.constant 0 : i32
    return %c0_i32, %c0_i32_0 : i32, i32
  }
  func.func @transform_8(%arg0: i32) -> (i32, i32) {
    %c0_i32 = arith.constant 0 : i32
    %c0_i32_0 = arith.constant 0 : i32
    %c0_i32_1 = arith.constant 0 : i32
    return %c0_i32, %c0_i32_0 : i32, i32
  }
  func.func @transform_9(%arg0: i32) -> (i32, i32) {
    %c0_i32 = arith.constant 0 : i32
    %c0_i32_0 = arith.constant 0 : i32
    %c0_i32_1 = arith.constant 0 : i32
    return %c0_i32, %c0_i32_0 : i32, i32
  }
}

</mosaic_0001>

<llo_original>
// kernel: q_function_forward.1
$region0: #{q_function_forward.1}
  #allocation0 [shape = 'u32[]', space=smem, size = 0x4, offset = 0x4, fixed_abs, tag = 'smem constant byte address 0x4 - core index']
  #allocation1 [shape = 'u32[72,128]{1,0:T(1,128)}', space=vmem, size = 0x9000, scoped, tag = 'internal scratch']
  #allocation2 [shape = 'f32[1,1]{1,0:T(1,128)S(1)}', space=vmem, size = 0x200, scoped, tag = 'scoped memory for q_function_forward.1']
  %s0 = inlined_call_operand.vmem [shape: f32[2,24], index: 0, kind: input, shape index: {}]
  %s1 = inlined_call_operand.vmem [shape: f32[2,8], index: 1, kind: input, shape index: {}]
  %s2 = inlined_call_operand.vmem [shape: f32[24,64], index: 2, kind: input, shape index: {}]
  %s3 = inlined_call_operand.vmem [shape: f32[8,64], index: 3, kind: input, shape index: {}]
  %s4 = inlined_call_operand.vmem [shape: f32[1,64], index: 4, kind: input, shape index: {}]
  %s5 = inlined_call_operand.vmem [shape: f32[64,32], index: 5, kind: input, shape index: {}]
  %s6 = inlined_call_operand.vmem [shape: f32[1,32], index: 6, kind: input, shape index: {}]
  %s7 = inlined_call_operand.vmem [shape: f32[1,32], index: 7, kind: input, shape index: {}]
  %s8 = inlined_call_operand.<no memory space> [shape: f32[1,1], index: 8, kind: input, shape index: {}]
  %s9 = inlined_call_operand.vmem [shape: f32[2,1], index: 9, kind: output, shape index: {}]
  %s10 = sld [smem:[#allocation0]]
  $region46: #{q_function_forward.1} parent=0
    _
  %s12 = ssub.s32 1, %s10
  %s13 = scalar_select 0, %s12, %s10
  %v14 = vstv %s8
  %15 = vst [vmem:[#allocation2] sm:$0x1] %v14
  // Predicated region
  $region2: #{q_function_forward.1} parent=0 // pred_check
    _
  $region3: #{q_function_forward.1} parent=0 // pred_check_branch
    %17 = sbr.rel (0) target = $region5
  $region4: #{q_function_forward.1} parent=0 // pred_region
    _
  $region5: #{q_function_forward.1} parent=0 // pred_fallthru
    _
  // Predicated region
  $region6: #{q_function_forward.1} parent=0 // pred_check
    _
  $region7: #{q_function_forward.1} parent=0 // pred_check_branch
    %19 = sbr.rel (0) target = $region9
  $region8: #{q_function_forward.1} parent=0 // pred_region
    _
  $region9: #{q_function_forward.1} parent=0 // pred_fallthru
    _
  // Predicated region
  $region10: #{q_function_forward.1} parent=0 // pred_check
    _
  $region11: #{q_function_forward.1} parent=0 // pred_check_branch
    %21 = sbr.rel (0) target = $region13
  $region12: #{q_function_forward.1} parent=0 // pred_region
    _
  $region13: #{q_function_forward.1} parent=0 // pred_fallthru
    _
  // Predicated region
  $region14: #{q_function_forward.1} parent=0 // pred_check
    _
  $region15: #{q_function_forward.1} parent=0 // pred_check_branch
    %23 = sbr.rel (0) target = $region17
  $region16: #{q_function_forward.1} parent=0 // pred_region
    _
  $region17: #{q_function_forward.1} parent=0 // pred_fallthru
    _
  // Predicated region
  $region18: #{q_function_forward.1} parent=0 // pred_check
    _
  $region19: #{q_function_forward.1} parent=0 // pred_check_branch
    %25 = sbr.rel (0) target = $region21
  $region20: #{q_function_forward.1} parent=0 // pred_region
    _
  $region21: #{q_function_forward.1} parent=0 // pred_fallthru
    _
  // Predicated region
  $region22: #{q_function_forward.1} parent=0 // pred_check
    _
  $region23: #{q_function_forward.1} parent=0 // pred_check_branch
    %27 = sbr.rel (0) target = $region25
  $region24: #{q_function_forward.1} parent=0 // pred_region
    _
  $region25: #{q_function_forward.1} parent=0 // pred_fallthru
    _
  // Predicated region
  $region26: #{q_function_forward.1} parent=0 // pred_check
    _
  $region27: #{q_function_forward.1} parent=0 // pred_check_branch
    %29 = sbr.rel (0) target = $region29
  $region28: #{q_function_forward.1} parent=0 // pred_region
    _
  $region29: #{q_function_forward.1} parent=0 // pred_fallthru
    _
  // Predicated region
  $region30: #{q_function_forward.1} parent=0 // pred_check
    _
  $region31: #{q_function_forward.1} parent=0 // pred_check_branch
    %31 = sbr.rel (0) target = $region33
  $region32: #{q_function_forward.1} parent=0 // pred_region
    _
  $region33: #{q_function_forward.1} parent=0 // pred_fallthru
    _
  // Predicated region
  $region34: #{q_function_forward.1} parent=0 // pred_check
    _
  $region35: #{q_function_forward.1} parent=0 // pred_check_branch
    %33 = sbr.rel (0) target = $region37
  $region36: #{q_function_forward.1} parent=0 // pred_region
    _
  $region37: #{q_function_forward.1} parent=0 // pred_fallthru
    _
  %v34 = vld [vmem:[%s0] sm:$0x3]
  %v35 = vld [vmem:[%s2] sm:$0xff]
  %v36 = vld [vmem:[%s2 + $0x8] sm:$0xff]
  %v37 = vld [vmem:[%s2 + $0x10] sm:$0xff]
  %v38 = vld [vmem:[%s1] sm:$0x3]
  %v39 = vld [vmem:[%s3] sm:$0xff]
  %vm40 = vcmask 64512
  %v42 = vsel %vm40, %v38, 0
  %44 = vmatpush.msra.mxu0 0.0
  %45 = vmatpush.msra.mxu0 0.0
  %46 = vmatpush.msra.mxu0 0.0
  %47 = vmatpush.msra.mxu0 0.0
  %48 = vmatpush.msra.mxu0 0.0
  %49 = vmatpush.msra.mxu0 0.0
  %50 = vmatpush.msra.mxu0 0.0
  %51 = vmatpush.msra.mxu0 0.0
  %52 = vmatpush.msra.mxu0 0.0
  %53 = vmatpush.msra.mxu0 0.0
  %54 = vmatpush.msra.mxu0 0.0
  %55 = vmatpush.msra.mxu0 0.0
  %56 = vmatpush.msra.mxu0 0.0
  %57 = vmatpush.msra.mxu0 0.0
  %58 = vmatpush.msra.mxu0 0.0
  %59 = vmatpush.msra.mxu0 %v39
  %60 = vmatmul.f32.gmra.mxu0 %v42
  %v61 = vpop.f32.mrf.mxu0
  %v62 = vadd.f32 0.0, %v61
  %63 = vdwg.mxu0
  %vm64 = vcmask 195584
  %v66 = vsel %vm64, %v34, 0
  %68 = vmatpush.msra.mxu0 0.0
  %69 = vmatpush.msra.mxu0 0.0
  %70 = vmatpush.msra.mxu0 0.0
  %71 = vmatpush.msra.mxu0 0.0
  %72 = vmatpush.msra.mxu0 0.0
  %73 = vmatpush.msra.mxu0 0.0
  %74 = vmatpush.msra.mxu0 0.0
  %75 = vmatpush.msra.mxu0 0.0
  %76 = vmatpush.msra.mxu0 0.0
  %77 = vmatpush.msra.mxu0 0.0
  %78 = vmatpush.msra.mxu0 0.0
  %79 = vmatpush.msra.mxu0 0.0
  %80 = vmatpush.msra.mxu0 0.0
  %81 = vmatpush.msra.mxu0 %v37
  %82 = vmatpush.msra.mxu0 %v36
  %83 = vmatpush.msra.mxu0 %v35
  %84 = vmatmul.f32.gmra.mxu0 %v66
  %v85 = vpop.f32.mrf.mxu0
  %v86 = vadd.f32 %v62, %v85
  %87 = vdwg.mxu0
  %v88 = vld [vmem:[%s4] sm:$0x1]
  %v90 = vperm.slane %v88, 0
  %v92 = vadd.f32 %v86, %v90
  %v93 = vmax.f32 %v92, 0.0
  %v94 = vld [vmem:[%s5] sm:$0xff]
  %v95 = vld [vmem:[%s5 + $0x8] sm:$0xff]
  %v96 = vld [vmem:[%s5 + $0x10] sm:$0xff]
  %v97 = vld [vmem:[%s5 + $0x18] sm:$0xff]
  %v98 = vld [vmem:[%s5 + $0x20] sm:$0xff]
  %v99 = vld [vmem:[%s5 + $0x28] sm:$0xff]
  %v100 = vld [vmem:[%s5 + $0x30] sm:$0xff]
  %v101 = vld [vmem:[%s5 + $0x38] sm:$0xff]
  %v102 = vld [vmem:[%s6] sm:$0x1]
  %v104 = vperm.slane %v102, 0
  %vm106 = vcmask 523264
  %v108 = vsel %vm106, %v93, 0
  %110 = vmatpush.msra.mxu0 0.0
  %111 = vmatpush.msra.mxu0 0.0
  %112 = vmatpush.msra.mxu0 0.0
  %113 = vmatpush.msra.mxu0 0.0
  %114 = vmatpush.msra.mxu0 0.0
  %115 = vmatpush.msra.mxu0 0.0
  %116 = vmatpush.msra.mxu0 0.0
  %117 = vmatpush.msra.mxu0 0.0
  %118 = vmatpush.msra.mxu0 %v101
  %119 = vmatpush.msra.mxu0 %v100
  %120 = vmatpush.msra.mxu0 %v99
  %121 = vmatpush.msra.mxu0 %v98
  %122 = vmatpush.msra.mxu0 %v97
  %123 = vmatpush.msra.mxu0 %v96
  %124 = vmatpush.msra.mxu0 %v95
  %125 = vmatpush.msra.mxu0 %v94
  %126 = vmatmul.f32.gmra.mxu0 %v108
  %v127 = vpop.f32.mrf.mxu0
  %v128 = vadd.f32 %v104, %v127
  %129 = vdwg.mxu0
  %v130 = vmax.f32 %v128, 0.0
  %v131 = vld [vmem:[%s7] sm:$0x1]
  %v133 = vperm.slane %v131, 0
  %v135 = vmul.f32 %v130, %v133
  %vm136 = vcmask 254976
  %v137 = vsel %vm136, %v135, 0.0
  %138 = vadd.xlane.f32.xlu0 %v137
  %v139 = vpop.xlane.xlu0 %138
  %v140 = vld [vmem:[#allocation2] sm:$0x1]
  %v142 = vperm.slane %v140, 0
  %v144 = vadd.f32 %v139, %v142
  %vm145 = vcmask 1024
  %146 = vst.msk [vmem:[%s9] sm:$0x3] %vm145, %v144
  // Predicated region
  $region38: #{q_function_forward.1} parent=0 // pred_check
    _
  $region39: #{q_function_forward.1} parent=0 // pred_check_branch
    %148 = sbr.rel (0) target = $region41
  $region40: #{q_function_forward.1} parent=0 // pred_region
    _
  $region41: #{q_function_forward.1} parent=0 // pred_fallthru
    _
  // Predicated region
  $region42: #{q_function_forward.1} parent=0 // pred_check
    _
  $region43: #{q_function_forward.1} parent=0 // pred_check_branch
    %150 = sbr.rel (0) target = $region45
  $region44: #{q_function_forward.1} parent=0 // pred_region
    _
  $region45: #{q_function_forward.1} parent=0 // pred_fallthru
    _

</llo_original>
